<compile_context>
chip_gen: v6e
topology: v6e:2x2x1
jax: 0.10.0
libtpu: 0.0.40
codegen_flags: <defaults>
</compile_context>

<pallas_src>
import functools

import jax
import jax.numpy as jnp
from jax.experimental import pallas as pl
from jax.experimental.pallas import tpu as pltpu

# "config" constants (synthetic, small)
NUM_VIDEOS = 16
LATENT_DIMENSION = 128

MAX_TILE_B = 512        # rows per grid step, upper bound (256 KiB f32 output block)
MIN_ROWS_FOR_PALLAS = 64  # below this, plain XLA gather is strictly faster


def _round_up(x: int, m: int) -> int:
    return ((x + m - 1) // m) * m


def _choose_tile_b(b: int) -> int:
    """Pick rows-per-grid-step: multiple of 8, <= MAX_TILE_B, and (when the
    batch is big enough) small enough that the grid keeps >= ~4 steps so the
    'parallel' axis can be split across v7x's two TensorCores."""
    b8 = _round_up(max(b, 1), 8)
    tile_b = min(b8, MAX_TILE_B)
    if b8 > 32 and pl.cdiv(b8, tile_b) < 4:
        tile_b = max(8, _round_up((b8 + 3) // 4, 8))
    return tile_b


def _gather_tile_kernel(idx_ref, lat_ref, o_ref, *, num_videos: int):
    # idx_ref : (tile_b, 1) int32 tile of (padded) batch indices, in VMEM
    # lat_ref : (num_videos, d) resident latent table in VMEM
    # o_ref   : (tile_b, d) output tile for this grid step
    idx = idx_ref[...]  # (tile_b, 1) int32

    # In-kernel wrap: matches latents[idx] for valid and negative indices and
    # keeps the (unchecked) table access in bounds.
    row = jax.lax.rem(idx, jnp.int32(num_videos))
    row = jnp.where(row < 0, row + num_videos, row)          # floored mod, in [0, N)

    # Vectorized gather as a one-hot matmul on the MXU (exact for 0/1 weights).
    tile_b = idx.shape[0]
    iota = jax.lax.broadcasted_iota(jnp.int32, (tile_b, num_videos), 1)
    one_hot = (iota == row).astype(lat_ref.dtype)             # (tile_b, num_videos)
    out = jnp.dot(one_hot, lat_ref[...], preferred_element_type=jnp.float32)
    o_ref[...] = out.astype(o_ref.dtype)


def latent_codes_forward(
    latents: jax.Array,
    idx: jax.Array,
    *,
    force_pallas: bool = False,
) -> jax.Array:
    """Equivalent of `LatentCodes.forward(idx)` == latents[idx] for 1-D idx.

    Out-of-range indices are wrapped mod NUM_VIDEOS (PyTorch would raise for
    |idx| > NUM_VIDEOS; negative indices in range behave identically).
    """
    assert latents.ndim == 2
    assert idx.ndim == 1
    num_videos, d = latents.shape
    b = idx.shape[0]
    idx = idx.astype(jnp.int32)

    # Tiny batches: fixed pallas_call overhead dwarfs the useful work -> XLA.
    if not force_pallas and b < MIN_ROWS_FOR_PALLAS:
        return latents[jnp.remainder(idx, jnp.int32(num_videos))]

    tile_b = _choose_tile_b(b)
    b_pad = _round_up(b, tile_b)
    if b_pad != b:
        # Padding rows gather row 0 and are sliced off afterwards.
        idx = jnp.pad(idx, (0, b_pad - b))
    idx2d = idx.reshape(b_pad, 1)

    grid_spec = pltpu.PrefetchScalarGridSpec(
        num_scalar_prefetch=0,
        grid=(b_pad // tile_b,),
        in_specs=[
            # Per-tile index vector, (tile_b, 1) int32 in VMEM.
            pl.BlockSpec((tile_b, 1), lambda i: (i, 0)),
            # Whole latent table resident in VMEM; constant block index ->
            # DMA'd once, reused across all grid steps.
            pl.BlockSpec((num_videos, d), lambda i: (0, 0)),
        ],
        out_specs=pl.BlockSpec((tile_b, d), lambda i: (i, 0)),
    )

    out = pl.pallas_call(
        functools.partial(_gather_tile_kernel, num_videos=num_videos),
        out_shape=jax.ShapeDtypeStruct((b_pad, d), latents.dtype),
        grid_spec=grid_spec,
        compiler_params=pltpu.CompilerParams(
            # Independent output tiles -> shardable across v7x's 2 TensorCores.
            dimension_semantics=("parallel",),
        ),
    )(idx2d, latents)

    return out[:b] if b_pad != b else out


class LatentCodes:
    """Thin JAX-side wrapper mirroring the PyTorch module."""

    def __init__(self, key):
        # torch.rand -> uniform [0, 1)
        self.latents = jax.random.uniform(
            key, (NUM_VIDEOS, LATENT_DIMENSION), dtype=jnp.float32
        )

    def forward(self, idx, *, force_pallas: bool = False):
        return latent_codes_forward(self.latents, idx, force_pallas=force_pallas)

    def get_codes(self):
        return self.latents


if __name__ == "__main__":
    key = jax.random.PRNGKey(0)
    k_lat, k_idx = jax.random.split(key)

    module = LatentCodes(k_lat)

    # 1) Batch large enough to take the Pallas path (non-multiple of the tile
    #    size, exercises padding + multi-step grid).
    b = 300
    idx = jax.random.randint(k_idx, (b,), 0, NUM_VIDEOS, dtype=jnp.int32)
    out = jax.block_until_ready(module.forward(idx))
    ref = module.latents[idx]
    assert out.shape == (b, LATENT_DIMENSION)
    assert out.dtype == jnp.float32
    assert bool(jnp.array_equal(out, ref))

    # 2) Small batch with a negative (wrapped) index, forced through the
    #    Pallas kernel to check the tiny-tile path.
    idx2 = jnp.array([3, -1, 0, 5, 15], dtype=jnp.int32)
    out2 = jax.block_until_ready(module.forward(idx2, force_pallas=True))
    ref2 = module.latents[jnp.remainder(idx2, NUM_VIDEOS)]
    assert out2.shape == (5, LATENT_DIMENSION)
    assert bool(jnp.array_equal(out2, ref2))

    # 3) Same small batch via the size-based XLA fallback path.
    out3 = jax.block_until_ready(module.forward(idx2))
    assert bool(jnp.array_equal(out3, ref2))

    print("KERNEL_OK")
</pallas_src>

<mosaic_0001>
module attributes {stable_mosaic.version = 11 : i64} {
  func.func @_gather_tile_kernel(%arg0: i32, %arg1: memref<80x1xi32, #tpu.memory_space<vmem>>, %arg2: memref<16x128xf32, #tpu.memory_space<vmem>>, %arg3: memref<80x128xf32, #tpu.memory_space<vmem>>) attributes {dimension_semantics = [#tpu.dimension_semantics<parallel>], iteration_bounds = array<i64: 4>, scalar_prefetch = 0 : i64, scratch_operands = 0 : i64, tpu.core_type = #tpu.core_type<tc>, window_params = [{transform_indices = @transform_0, window_bounds = array<i64: 80, 1>}, {pipeline_mode = #tpu.pipeline_mode<synchronous>, transform_indices = @transform_1, window_bounds = array<i64: 16, 128>}, {transform_indices = @transform_2, window_bounds = array<i64: 80, 128>}]} {
    %c0 = arith.constant 0 : index
    %c0_0 = arith.constant 0 : index
    %0 = vector.load %arg1[%c0, %c0_0] : memref<80x1xi32, #tpu.memory_space<vmem>>, vector<80x1xi32>
    %c16_i32 = arith.constant 16 : i32
    %1 = vector.broadcast %c16_i32 : i32 to vector<80x1xi32>
    %2 = arith.remsi %0, %1 : vector<80x1xi32>
    %c0_i32 = arith.constant 0 : i32
    %3 = vector.broadcast %c0_i32 : i32 to vector<80x1xi32>
    %4 = arith.cmpi slt, %2, %3 : vector<80x1xi32>
    %c16_i32_1 = arith.constant 16 : i32
    %5 = vector.broadcast %c16_i32_1 : i32 to vector<80x1xi32>
    %6 = arith.addi %2, %5 : vector<80x1xi32>
    %7 = arith.select %4, %6, %2 : vector<80x1xi1>, vector<80x1xi32>
    %8 = tpu.iota {dimensions = array<i32: 1>} : vector<80x16xi32>
    %9 = vector.broadcast %7 : vector<80x1xi32> to vector<80x16xi32>
    %10 = arith.cmpi eq, %8, %9 : vector<80x16xi32>
    %11 = arith.extui %10 : vector<80x16xi1> to vector<80x16xi32>
    %12 = arith.sitofp %11 : vector<80x16xi32> to vector<80x16xf32>
    %c0_2 = arith.constant 0 : index
    %c0_3 = arith.constant 0 : index
    %13 = vector.load %arg2[%c0_2, %c0_3] : memref<16x128xf32, #tpu.memory_space<vmem>>, vector<16x128xf32>
    %cst = arith.constant dense<0.000000e+00> : vector<80x128xf32>
    %14 = tpu.matmul %12, %13, %cst {dimension_numbers = #tpu.dot_dimension_numbers<[1], [0], [0], [1], [0, 0, 1, 1], [], []>} : vector<80x16xf32>, vector<16x128xf32>, vector<80x128xf32> -> vector<80x128xf32>
    %c0_4 = arith.constant 0 : index
    %c0_5 = arith.constant 0 : index
    %15 = vector.load %arg3[%c0_4, %c0_5] : memref<80x128xf32, #tpu.memory_space<vmem>>, vector<80x128xf32>
    tpu.vector_store %arg3[%c0_4, %c0_5], %14 {strides = array<i32>} : memref<80x128xf32, #tpu.memory_space<vmem>>, vector<80x128xf32>,
    return
  }
  func.func @transform_0(%arg0: i32) -> (i32, i32) {
    %c0_i32 = arith.constant 0 : i32
    %c0_i32_0 = arith.constant 0 : i32
    return %arg0, %c0_i32 : i32, i32
  }
  func.func @transform_1(%arg0: i32) -> (i32, i32) {
    %c0_i32 = arith.constant 0 : i32
    %c0_i32_0 = arith.constant 0 : i32
    %c0_i32_1 = arith.constant 0 : i32
    return %c0_i32, %c0_i32_0 : i32, i32
  }
  func.func @transform_2(%arg0: i32) -> (i32, i32) {
    %c0_i32 = arith.constant 0 : i32
    %c0_i32_0 = arith.constant 0 : i32
    return %arg0, %c0_i32 : i32, i32
  }
}

</mosaic_0001>

<llo_original>
// kernel: tpu_custom_call.1
$region0: #{tpu_custom_call.1}
  #allocation0 [shape = 'u32[]', space=smem, size = 0x4, offset = 0x4, fixed_abs, tag = 'smem constant byte address 0x4 - core index']
  #allocation1 [shape = 'u32[144,128]{1,0:T(1,128)}', space=vmem, size = 0x12000, scoped, tag = 'internal scratch']
  %s0 = inlined_call_operand.vmem [shape: s32[320,1], index: 0, kind: input, shape index: {}]
  %s1 = inlined_call_operand.vmem [shape: f32[16,128], index: 1, kind: input, shape index: {}]
  %s2 = inlined_call_operand.hbm [shape: f32[320,128], index: 2, kind: output, shape index: {}]
  %s3 = sld [smem:[#allocation0]]
  $region41: #{tpu_custom_call.1} parent=0
    _
  %s5 = ssub.s32 1, %s3
  %s6 = scalar_select 0, %s5, %s3
  $region1: #{tpu_custom_call.1} parent=0
    #allocation2 [shape = 'u8[81920]{0}', space=vmem, size = 0x14000, scoped, tag = 'output window, operand 0']
    #allocation3 [shape = 's32[2]{0}', space=sflag, size = 0x8, scoped, tag = 'scoped memory for tpu_custom_call.1']
    %7 = vsyncpa [#allocation3], 0
    %s8 = scalar_lea.sflag [#allocation3], 1
    %9 = vsyncpa %s8, 0
    loop: start=0, step=1, limit=6
    $region2: #{tpu_custom_call.1} parent=1 // loop_pre_header
      _
    $region3: #{tpu_custom_call.1} parent=1 // loop_header
      %s11 = sphi 0, %s15
      %p12 = scmp.ge.s32.totalorder %s11, 6
      %s21 = sphi 0, %s23
      %s24 = sphi 0, %s21
      %s25 = sphi 0, %s24
      %s41 = sphi 0, %s25
      %s45 = sphi 0, %s45
      %s47 = sphi 0, %s45
      %s48 = sphi 0, %s47
      %s62 = sphi 0, %s48
      %s68 = sphi 0, %s70
      %s71 = sphi 0, %s68
      %s72 = sphi 0, %s71
      %s88 = sphi 0, %s72
    $region4: #{tpu_custom_call.1} parent=1 // loop_header_branch
      %14 = sbr.rel (%p12) target = $region8
    $region5: #{tpu_custom_call.1} parent=1 // loop_body
      %s16 = ssub.s32 %s11, 1
      %s17 = ssub.s32 %s11, 2
      %s18 = sadd.s32 %s11, 1
      %s19 = ssub.s32 %s11, %s18
      %p20 = scmp.eq.s32.totalorder %s19, 0
      %s22 = sadd.s32 %s21, 1
      %s23 = scalar_select %p20, %s21, %s22
      %p26 = pneg %p20
      %p27 = scmp.eq.s32.totalorder %s11, 3
      %p28 = por %p26, %p27
      %p29 = scmp.ne.s32.totalorder %s21, %s24
      %p30 = scmp.eq.s32.totalorder %s11, 0
      %p31 = por %p29, %p30
      %p32 = scmp.ne.s32.totalorder %s21, %s24
      %p33 = scmp.eq.s32.totalorder %s16, 3
      %p34 = por %p32, %p33
      %p35 = scmp.ne.s32.totalorder %s24, %s25
      %p36 = scmp.eq.s32.totalorder %s16, 0
      %p37 = por %p35, %p36
      %p38 = scmp.ne.s32.totalorder %s24, %s25
      %p39 = scmp.eq.s32.totalorder %s17, 3
      %p40 = por %p38, %p39
      %p42 = scmp.ne.s32.totalorder %s25, %s41
      %p43 = scmp.eq.s32.totalorder %s17, 0
      %p44 = por %p42, %p43
      %s46 = sadd.s32 %s45, 1
      %p49 = scmp.eq.s32.totalorder %s11, 3
      %p50 = scmp.ne.s32.totalorder %s45, %s47
      %p51 = scmp.eq.s32.totalorder %s11, 0
      %p52 = por %p50, %p51
      %p53 = scmp.ne.s32.totalorder %s45, %s47
      %p54 = scmp.eq.s32.totalorder %s16, 3
      %p55 = por %p53, %p54
      %p56 = scmp.ne.s32.totalorder %s47, %s48
      %p57 = scmp.eq.s32.totalorder %s16, 0
      %p58 = por %p56, %p57
      %p59 = scmp.ne.s32.totalorder %s47, %s48
      %p60 = scmp.eq.s32.totalorder %s17, 3
      %p61 = por %p59, %p60
      %p63 = scmp.ne.s32.totalorder %s48, %s62
      %p64 = scmp.eq.s32.totalorder %s17, 0
      %p65 = por %p63, %p64
      %s66 = ssub.s32 %s11, %s18
      %p67 = scmp.eq.s32.totalorder %s66, 0
      %s69 = sadd.s32 %s68, 1
      %s70 = scalar_select %p67, %s68, %s69
      %p73 = pneg %p67
      %p74 = scmp.eq.s32.totalorder %s11, 3
      %p75 = por %p73, %p74
      %p76 = scmp.ne.s32.totalorder %s68, %s71
      %p77 = scmp.eq.s32.totalorder %s11, 0
      %p78 = por %p76, %p77
      %p79 = scmp.ne.s32.totalorder %s68, %s71
      %p80 = scmp.eq.s32.totalorder %s16, 3
      %p81 = por %p79, %p80
      %p82 = scmp.ne.s32.totalorder %s71, %s72
      %p83 = scmp.eq.s32.totalorder %s16, 0
      %p84 = por %p82, %p83
      %p85 = scmp.ne.s32.totalorder %s71, %s72
      %p86 = scmp.eq.s32.totalorder %s17, 3
      %p87 = por %p85, %p86
      %p89 = scmp.ne.s32.totalorder %s72, %s88
      %p90 = scmp.eq.s32.totalorder %s17, 0
      %p91 = por %p89, %p90
      %p92 = scmp.le.s32.totalorder 1, %s11
      %p93 = scmp.lt.s32.totalorder %s11, 5
      %p94 = pnand %p92, %p93
      %p95 = pneg %p94
      // Predicated region
      $region9: #{tpu_custom_call.1} parent=5 // pred_check
        _
      $region10: #{tpu_custom_call.1} parent=5 // pred_check_branch
        %97 = sbr.rel (%p94) target = $region12
      $region11: #{tpu_custom_call.1} parent=5 // pred_region
        %s98 = ssub.s32 %s11, 1
        // Predicated region
        $region13: #{tpu_custom_call.1} parent=11 // pred_check
          %p99 = pneg %p58
        $region14: #{tpu_custom_call.1} parent=11 // pred_check_branch
          %101 = sbr.rel (%p99) target = $region16
        $region15: #{tpu_custom_call.1} parent=11 // pred_region
          _
        $region16: #{tpu_custom_call.1} parent=11 // pred_fallthru
          _
      $region12: #{tpu_custom_call.1} parent=5 // pred_fallthru
        _
      %p102 = scmp.lt.s32.totalorder %s11, 4
      // Predicated region
      $region17: #{tpu_custom_call.1} parent=5 // pred_check
        %p103 = pneg %p102
      $region18: #{tpu_custom_call.1} parent=5 // pred_check_branch
        %105 = sbr.rel (%p103) target = $region20
      $region19: #{tpu_custom_call.1} parent=5 // pred_region
        // Predicated region
        $region21: #{tpu_custom_call.1} parent=19 // pred_check
          %p106 = pneg %p31
        $region22: #{tpu_custom_call.1} parent=19 // pred_check_branch
          %108 = sbr.rel (%p106) target = $region24
        $region23: #{tpu_custom_call.1} parent=19 // pred_region
          %s109 = smul.u32 10, %s11
          %p110 = scmp.lt.s32.totalorder %s109, 39
          %s111 = scalar_select %p110, %s109, 39
          %s112 = smul.addr %s111, 8
          %s113 = scalar_lea.vmem %s0, %s112
          %s114 = smul.u32 10, %s11
        $region24: #{tpu_custom_call.1} parent=19 // pred_fallthru
          _
      $region20: #{tpu_custom_call.1} parent=5 // pred_fallthru
        _
      %p115 = scmp.le.s32.totalorder 1, %s11
      %p116 = scmp.lt.s32.totalorder %s11, 5
      %p117 = pnand %p115, %p116
      %p118 = pneg %p117
      // Predicated region
      $region25: #{tpu_custom_call.1} parent=5 // pred_check
        _
      $region26: #{tpu_custom_call.1} parent=5 // pred_check_branch
        %120 = sbr.rel (%p117) target = $region28
      $region27: #{tpu_custom_call.1} parent=5 // pred_region
        %s121 = ssub.s32 %s11, 1
        %s122 = smul.u32 10, %s16
        %p123 = scmp.lt.s32.totalorder %s122, 39
        %s124 = scalar_select %p123, %s122, 39
        %s125 = smul.addr %s124, 8
        %s126 = scalar_lea.vmem %s0, %s125
        %p127 = pneg %p37
        %p128 = pneg %p34
        %p129 = pneg %p58
        %p130 = pneg %p55
        %p131 = pneg %p84
        %p132 = pneg %p81
        %s133 = sand.u32 %s71, 1
        %s134 = scalar_lea.sflag [#allocation3], %s133
        %s135 = sand.u32 %s71, 1
        %s136 = smul.addr %s135, 80
        %s137 = scalar_lea.vmem [#allocation2], %s136
        %s138 = smul.u32 10, %s16
        %p139 = scmp.lt.s32.totalorder %s138, 39
        %s140 = scalar_select %p139, %s138, 39
        %s141 = smul.addr %s140, 8
        %s142 = scalar_lea.vmem %s0, %s141
        %s143 = smul.u32 10, %s16
        %s144 = smul.u32 10, %s16
        %v145 = vld [vmem:[%s142] sm:$0xff]
        %v146 = vld [vmem:[%s142 + $0x8] sm:$0xff]
        %v147 = vld [vmem:[%s142 + $0x10] sm:$0xff]
        %v148 = vld [vmem:[%s142 + $0x18] sm:$0xff]
        %v149 = vld [vmem:[%s142 + $0x20] sm:$0xff]
        %v150 = vld [vmem:[%s142 + $0x28] sm:$0xff]
        %v151 = vld [vmem:[%s142 + $0x30] sm:$0xff]
        %v152 = vld [vmem:[%s142 + $0x38] sm:$0xff]
        %v153 = vld [vmem:[%s142 + $0x40] sm:$0xff]
        %v154 = vld [vmem:[%s142 + $0x48] sm:$0xff]
        %vm155 = vcmp.lt.s32.totalorder %v145, 0
        %v156 = vsub.s32 0, %v145
        %v157 = vsel %vm155, %v156, %v145
        %v158 = vshrl.u32 %v157, 4
        %v159 = vand.u32 %v157, 15
        %v160 = vsub.s32 0, %v159
        %v161 = vsel %vm155, %v160, %v159
        %vm162 = vcmp.lt.s32.totalorder %v146, 0
        %v163 = vsub.s32 0, %v146
        %v164 = vsel %vm162, %v163, %v146
        %v165 = vshrl.u32 %v164, 4
        %v166 = vand.u32 %v164, 15
        %v167 = vsub.s32 0, %v166
        %v168 = vsel %vm162, %v167, %v166
        %vm169 = vcmp.lt.s32.totalorder %v147, 0
        %v170 = vsub.s32 0, %v147
        %v171 = vsel %vm169, %v170, %v147
        %v172 = vshrl.u32 %v171, 4
        %v173 = vand.u32 %v171, 15
        %v174 = vsub.s32 0, %v173
        %v175 = vsel %vm169, %v174, %v173
        %vm176 = vcmp.lt.s32.totalorder %v148, 0
        %v177 = vsub.s32 0, %v148
        %v178 = vsel %vm176, %v177, %v148
        %v179 = vshrl.u32 %v178, 4
        %v180 = vand.u32 %v178, 15
        %v181 = vsub.s32 0, %v180
        %v182 = vsel %vm176, %v181, %v180
        %vm183 = vcmp.lt.s32.totalorder %v149, 0
        %v184 = vsub.s32 0, %v149
        %v185 = vsel %vm183, %v184, %v149
        %v186 = vshrl.u32 %v185, 4
        %v187 = vand.u32 %v185, 15
        %v188 = vsub.s32 0, %v187
        %v189 = vsel %vm183, %v188, %v187
        %vm190 = vcmp.lt.s32.totalorder %v150, 0
        %v191 = vsub.s32 0, %v150
        %v192 = vsel %vm190, %v191, %v150
        %v193 = vshrl.u32 %v192, 4
        %v194 = vand.u32 %v192, 15
        %v195 = vsub.s32 0, %v194
        %v196 = vsel %vm190, %v195, %v194
        %vm197 = vcmp.lt.s32.totalorder %v151, 0
        %v198 = vsub.s32 0, %v151
        %v199 = vsel %vm197, %v198, %v151
        %v200 = vshrl.u32 %v199, 4
        %v201 = vand.u32 %v199, 15
        %v202 = vsub.s32 0, %v201
        %v203 = vsel %vm197, %v202, %v201
        %vm204 = vcmp.lt.s32.totalorder %v152, 0
        %v205 = vsub.s32 0, %v152
        %v206 = vsel %vm204, %v205, %v152
        %v207 = vshrl.u32 %v206, 4
        %v208 = vand.u32 %v206, 15
        %v209 = vsub.s32 0, %v208
        %v210 = vsel %vm204, %v209, %v208
        %vm211 = vcmp.lt.s32.totalorder %v153, 0
        %v212 = vsub.s32 0, %v153
        %v213 = vsel %vm211, %v212, %v153
        %v214 = vshrl.u32 %v213, 4
        %v215 = vand.u32 %v213, 15
        %v216 = vsub.s32 0, %v215
        %v217 = vsel %vm211, %v216, %v215
        %vm218 = vcmp.lt.s32.totalorder %v154, 0
        %v219 = vsub.s32 0, %v154
        %v220 = vsel %vm218, %v219, %v154
        %v221 = vshrl.u32 %v220, 4
        %v222 = vand.u32 %v220, 15
        %v223 = vsub.s32 0, %v222
        %v224 = vsel %vm218, %v223, %v222
        %vm225 = vcmp.lt.s32.totalorder %v161, 0
        %vm226 = vcmp.lt.s32.totalorder %v168, 0
        %vm227 = vcmp.lt.s32.totalorder %v175, 0
        %vm228 = vcmp.lt.s32.totalorder %v182, 0
        %vm229 = vcmp.lt.s32.totalorder %v189, 0
        %vm230 = vcmp.lt.s32.totalorder %v196, 0
        %vm231 = vcmp.lt.s32.totalorder %v203, 0
        %vm232 = vcmp.lt.s32.totalorder %v210, 0
        %vm233 = vcmp.lt.s32.totalorder %v217, 0
        %vm234 = vcmp.lt.s32.totalorder %v224, 0
        %v235 = vadd.s32 %v161, 16
        %v236 = vadd.s32 %v168, 16
        %v237 = vadd.s32 %v175, 16
        %v238 = vadd.s32 %v182, 16
        %v239 = vadd.s32 %v189, 16
        %v240 = vadd.s32 %v196, 16
        %v241 = vadd.s32 %v203, 16
        %v242 = vadd.s32 %v210, 16
        %v243 = vadd.s32 %v217, 16
        %v244 = vadd.s32 %v224, 16
        %v245 = vsel %vm225, %v235, %v161
        %v246 = vsel %vm226, %v236, %v168
        %v247 = vsel %vm227, %v237, %v175
        %v248 = vsel %vm228, %v238, %v182
        %v249 = vsel %vm229, %v239, %v189
        %v250 = vsel %vm230, %v240, %v196
        %v251 = vsel %vm231, %v241, %v203
        %v252 = vsel %vm232, %v242, %v210
        %v253 = vsel %vm233, %v243, %v217
        %v254 = vsel %vm234, %v244, %v224
        %v255 = vlaneseq
        %v256 = vand.u32 %v255, 127
        %257 = vset.pattern.permute.xlu0 0
        %258 = vperm.xlu0 %257, %v245
        %v259 = vpop.permute.xlu0 %258
        %260 = vset.pattern.permute.xlu0 0
        %261 = vperm.xlu0 %260, %v246
        %v262 = vpop.permute.xlu0 %261
        %263 = vset.pattern.permute.xlu0 0
        %264 = vperm.xlu0 %263, %v247
        %v265 = vpop.permute.xlu0 %264
        %266 = vset.pattern.permute.xlu0 0
        %267 = vperm.xlu0 %266, %v248
        %v268 = vpop.permute.xlu0 %267
        %269 = vset.pattern.permute.xlu0 0
        %270 = vperm.xlu0 %269, %v249
        %v271 = vpop.permute.xlu0 %270
        %272 = vset.pattern.permute.xlu0 0
        %273 = vperm.xlu0 %272, %v250
        %v274 = vpop.permute.xlu0 %273
        %275 = vset.pattern.permute.xlu0 0
        %276 = vperm.xlu0 %275, %v251
        %v277 = vpop.permute.xlu0 %276
        %278 = vset.pattern.permute.xlu0 0
        %279 = vperm.xlu0 %278, %v252
        %v280 = vpop.permute.xlu0 %279
        %281 = vset.pattern.permute.xlu0 0
        %282 = vperm.xlu0 %281, %v253
        %v283 = vpop.permute.xlu0 %282
        %284 = vset.pattern.permute.xlu0 0
        %285 = vperm.xlu0 %284, %v254
        %v286 = vpop.permute.xlu0 %285
        %vm287 = vcmp.eq.s32.totalorder %v256, %v259
        %vm288 = vcmp.eq.s32.totalorder %v256, %v262
        %vm289 = vcmp.eq.s32.totalorder %v256, %v265
        %vm290 = vcmp.eq.s32.totalorder %v256, %v268
        %vm291 = vcmp.eq.s32.totalorder %v256, %v271
        %vm292 = vcmp.eq.s32.totalorder %v256, %v274
        %vm293 = vcmp.eq.s32.totalorder %v256, %v277
        %vm294 = vcmp.eq.s32.totalorder %v256, %v280
        %vm295 = vcmp.eq.s32.totalorder %v256, %v283
        %vm296 = vcmp.eq.s32.totalorder %v256, %v286
        %v297 = vsel %vm287, 1, 0
        %v298 = vsel %vm288, 1, 0
        %v299 = vsel %vm289, 1, 0
        %v300 = vsel %vm290, 1, 0
        %v301 = vsel %vm291, 1, 0
        %v302 = vsel %vm292, 1, 0
        %v303 = vsel %vm293, 1, 0
        %v304 = vsel %vm294, 1, 0
        %v305 = vsel %vm295, 1, 0
        %v306 = vsel %vm296, 1, 0
        %v307 = vcvt.s32.f32 %v297
        %v308 = vcvt.s32.f32 %v298
        %v309 = vcvt.s32.f32 %v299
        %v310 = vcvt.s32.f32 %v300
        %v311 = vcvt.s32.f32 %v301
        %v312 = vcvt.s32.f32 %v302
        %v313 = vcvt.s32.f32 %v303
        %v314 = vcvt.s32.f32 %v304
        %v315 = vcvt.s32.f32 %v305
        %v316 = vcvt.s32.f32 %v306
        %v317 = vld [vmem:[%s1] sm:$0xff]
        %v318 = vld [vmem:[%s1 + $0x8] sm:$0xff]
        %vm319 = vcmask 130048
        %v321 = vsel %vm319, %v307, 0
        %v324 = vsel %vm319, %v308, 0
        %v327 = vsel %vm319, %v309, 0
        %v330 = vsel %vm319, %v310, 0
        %v333 = vsel %vm319, %v311, 0
        %v336 = vsel %vm319, %v312, 0
        %v339 = vsel %vm319, %v313, 0
        %v342 = vsel %vm319, %v314, 0
        %v345 = vsel %vm319, %v315, 0
        %v348 = vsel %vm319, %v316, 0
        %350 = vmatprep.subr.mxu0 0.0
        %351 = vmatpush1.msra.mxu0 0.0
        %352 = vmatprep.subr.mxu0 0.0
        %353 = vmatpush1.msra.mxu0 0.0
        %354 = vmatprep.subr.mxu0 0.0
        %355 = vmatpush1.msra.mxu0 0.0
        %356 = vmatprep.subr.mxu0 0.0
        %357 = vmatpush1.msra.mxu0 0.0
        %358 = vmatprep.subr.mxu0 0.0
        %359 = vmatpush1.msra.mxu0 0.0
        %360 = vmatprep.subr.mxu0 0.0
        %361 = vmatpush1.msra.mxu0 0.0
        %362 = vmatprep.subr.mxu0 0.0
        %363 = vmatpush1.msra.mxu0 0.0
        %364 = vmatprep.subr.mxu0 0.0
        %365 = vmatpush1.msra.mxu0 0.0
        %366 = vmatprep.subr.mxu0 0.0
        %367 = vmatpush1.msra.mxu0 0.0
        %368 = vmatprep.subr.mxu0 0.0
        %369 = vmatpush1.msra.mxu0 0.0
        %370 = vmatprep.subr.mxu0 0.0
        %371 = vmatpush1.msra.mxu0 0.0
        %372 = vmatprep.subr.mxu0 0.0
        %373 = vmatpush1.msra.mxu0 0.0
        %374 = vmatprep.subr.mxu0 0.0
        %375 = vmatpush1.msra.mxu0 0.0
        %376 = vmatprep.subr.mxu0 0.0
        %377 = vmatpush1.msra.mxu0 0.0
        %378 = vmatprep.subr.mxu0 0.0
        %379 = vmatpush1.msra.mxu0 %v318
        %380 = vmatprep.subr.mxu0 0.0
        %381 = vmatpush1.msra.mxu0 %v317
        %382 = vmatprep.subr.mxu0 0.0
        %383 = vmatpush2.msra.mxu0 0.0
        %384 = vmatprep.subr.mxu0 0.0
        %385 = vmatpush2.msra.mxu0 0.0
        %386 = vmatprep.subr.mxu0 0.0
        %387 = vmatpush2.msra.mxu0 0.0
        %388 = vmatprep.subr.mxu0 0.0
        %389 = vmatpush2.msra.mxu0 0.0
        %390 = vmatprep.subr.mxu0 0.0
        %391 = vmatpush2.msra.mxu0 0.0
        %392 = vmatprep.subr.mxu0 0.0
        %393 = vmatpush2.msra.mxu0 0.0
        %394 = vmatprep.subr.mxu0 0.0
        %395 = vmatpush2.msra.mxu0 0.0
        %396 = vmatprep.subr.mxu0 0.0
        %397 = vmatpush2.msra.mxu0 0.0
        %398 = vmatprep.subr.mxu0 0.0
        %399 = vmatpush2.msra.mxu0 0.0
        %400 = vmatprep.subr.mxu0 0.0
        %401 = vmatpush2.msra.mxu0 0.0
        %402 = vmatprep.subr.mxu0 0.0
        %403 = vmatpush2.msra.mxu0 0.0
        %404 = vmatprep.subr.mxu0 0.0
        %405 = vmatpush2.msra.mxu0 0.0
        %406 = vmatprep.subr.mxu0 0.0
        %407 = vmatpush2.msra.mxu0 0.0
        %408 = vmatprep.subr.mxu0 0.0
        %409 = vmatpush2.msra.mxu0 0.0
        %410 = vmatprep.subr.mxu0 0.0
        %411 = vmatpush2.msra.mxu0 0.0
        %412 = vmatprep.subr.mxu0 0.0
        %413 = vmatpush2.msra.mxu0 0.0
        %414 = vmatprep.mubr.f32.mxu0 0.0
        %415 = vmatmul.mubr.f32.gmra.mxu0 %v321
        %v416 = vpop.f32.mrf.mxu0
        %v417 = vadd.f32 0.0, %v416
        %v418 = vpop.f32.mrf.mxu0
        %419 = vmatprep.mubr.f32.mxu0 0.0
        %420 = vmatmul.mubr.f32.gmra.mxu0 %v324
        %v421 = vpop.f32.mrf.mxu0
        %v422 = vadd.f32 0.0, %v421
        %v423 = vpop.f32.mrf.mxu0
        %424 = vmatprep.mubr.f32.mxu0 0.0
        %425 = vmatmul.mubr.f32.gmra.mxu0 %v327
        %v426 = vpop.f32.mrf.mxu0
        %v427 = vadd.f32 0.0, %v426
        %v428 = vpop.f32.mrf.mxu0
        %429 = vmatprep.mubr.f32.mxu0 0.0
        %430 = vmatmul.mubr.f32.gmra.mxu0 %v330
        %v431 = vpop.f32.mrf.mxu0
        %v432 = vadd.f32 0.0, %v431
        %v433 = vpop.f32.mrf.mxu0
        %434 = vmatprep.mubr.f32.mxu0 0.0
        %435 = vmatmul.mubr.f32.gmra.mxu0 %v333
        %v436 = vpop.f32.mrf.mxu0
        %v437 = vadd.f32 0.0, %v436
        %v438 = vpop.f32.mrf.mxu0
        %439 = vmatprep.mubr.f32.mxu0 0.0
        %440 = vmatmul.mubr.f32.gmra.mxu0 %v336
        %v441 = vpop.f32.mrf.mxu0
        %v442 = vadd.f32 0.0, %v441
        %v443 = vpop.f32.mrf.mxu0
        %444 = vmatprep.mubr.f32.mxu0 0.0
        %445 = vmatmul.mubr.f32.gmra.mxu0 %v339
        %v446 = vpop.f32.mrf.mxu0
        %v447 = vadd.f32 0.0, %v446
        %v448 = vpop.f32.mrf.mxu0
        %449 = vmatprep.mubr.f32.mxu0 0.0
        %450 = vmatmul.mubr.f32.gmra.mxu0 %v342
        %v451 = vpop.f32.mrf.mxu0
        %v452 = vadd.f32 0.0, %v451
        %v453 = vpop.f32.mrf.mxu0
        %454 = vmatprep.mubr.f32.mxu0 0.0
        %455 = vmatmul.mubr.f32.gmra.mxu0 %v345
        %v456 = vpop.f32.mrf.mxu0
        %v457 = vadd.f32 0.0, %v456
        %v458 = vpop.f32.mrf.mxu0
        %459 = vmatprep.mubr.f32.mxu0 0.0
        %460 = vmatmul.mubr.f32.gmra.mxu0 %v348
        %v461 = vpop.f32.mrf.mxu0
        %v462 = vadd.f32 0.0, %v461
        %v463 = vpop.f32.mrf.mxu0
        %464 = vdwg.mxu0
        %465 = vst [vmem:[%s137] sm:$0xff] %v417
        %466 = vst [vmem:[%s137 + $0x8] sm:$0xff] %v422
        %467 = vst [vmem:[%s137 + $0x10] sm:$0xff] %v427
        %468 = vst [vmem:[%s137 + $0x18] sm:$0xff] %v432
        %469 = vst [vmem:[%s137 + $0x20] sm:$0xff] %v437
        %470 = vst [vmem:[%s137 + $0x28] sm:$0xff] %v442
        %471 = vst [vmem:[%s137 + $0x30] sm:$0xff] %v447
        %472 = vst [vmem:[%s137 + $0x38] sm:$0xff] %v452
        %473 = vst [vmem:[%s137 + $0x40] sm:$0xff] %v457
        %474 = vst [vmem:[%s137 + $0x48] sm:$0xff] %v462
        %s475 = sand.u32 %s71, 1
        %s476 = scalar_lea.sflag [#allocation3], %s475
        %s477 = sand.u32 %s71, 1
        %s478 = smul.addr %s477, 80
        %s479 = scalar_lea.vmem [#allocation2], %s478
        // Predicated region
        $region29: #{tpu_custom_call.1} parent=27 // pred_check
          %p480 = pneg %p81
        $region30: #{tpu_custom_call.1} parent=27 // pred_check_branch
          %482 = sbr.rel (%p480) target = $region32
        $region31: #{tpu_custom_call.1} parent=27 // pred_region
          %s483 = smul.u32 10, %s16
          %s485 = ssub.s32 1280, 1280
          %486 = vsyncadd %s476, %s485
          %s487 = smul.addr %s483, 128
          %s488 = scalar_lea.hbm %s2, %s487
          %s489 = sshll.u32 %s479, 4
          %s490 = int_to_ptr.vmem [resolvable:$true] %s489
          %495 = dma.vmem_to_hbm [thread:$0]  %s490, 1280, %s488, %s476, 128, 128, 8
        $region32: #{tpu_custom_call.1} parent=27 // pred_fallthru
          _
      $region28: #{tpu_custom_call.1} parent=5 // pred_fallthru
        _
      %p496 = scmp.le.s32.totalorder 2, %s11
      // Predicated region
      $region33: #{tpu_custom_call.1} parent=5 // pred_check
        %p497 = pneg %p496
      $region34: #{tpu_custom_call.1} parent=5 // pred_check_branch
        %499 = sbr.rel (%p497) target = $region36
      $region35: #{tpu_custom_call.1} parent=5 // pred_region
        %s500 = ssub.s32 %s11, 2
        // Predicated region
        $region37: #{tpu_custom_call.1} parent=35 // pred_check
          %p501 = pneg %p87
        $region38: #{tpu_custom_call.1} parent=35 // pred_check_branch
          %503 = sbr.rel (%p501) target = $region40
        $region39: #{tpu_custom_call.1} parent=35 // pred_region
          %s504 = sand.u32 %s72, 1
          %s505 = scalar_lea.sflag [#allocation3], %s504
          %s506 = sand.u32 %s72, 1
          %s507 = smul.addr %s506, 80
          %s508 = scalar_lea.vmem [#allocation2], %s507
          %509 = dma.done %s505, 1280
        $region40: #{tpu_custom_call.1} parent=35 // pred_fallthru
          _
      $region36: #{tpu_custom_call.1} parent=5 // pred_fallthru
        _
    $region6: #{tpu_custom_call.1} parent=1 // loop_footer
      %s15 = sadd.s32 1, %s11
    $region7: #{tpu_custom_call.1} parent=1 // loop_footer_branch
      %10 = sbr.rel target = $region3
    $region8: #{tpu_custom_call.1} parent=1 // loop_exit
      _
    %510 = vsyncpa [#allocation3], 1
    %s511 = scalar_lea.sflag [#allocation3], 1
    %512 = vsyncpa %s511, 1

</llo_original>
